<compile_context>
chip_gen: v6e
topology: v6e:2x2x1
jax: 0.10.0
libtpu: 0.0.40
codegen_flags: <defaults>
</compile_context>

<pallas_src>
import functools

import jax
import jax.numpy as jnp
from jax.experimental import pallas as pl
from jax.experimental.pallas import tpu as pltpu


VMEM_LIMIT_BYTES = 64 * 1024 * 1024  # fits v7x (64 MiB/TC) and v5e/v6e (128 MiB)


def _pick_tile(n, cap, align=8):
    """Largest t <= cap that divides n and is a multiple of `align`; else n."""
    if n <= cap:
        return n
    for t in range(cap, 0, -1):
        if n % t == 0 and t % align == 0:
            return t
    return n


# ---------------------------------------------------------------------------
# Kernel 1: fused Q/K/V projection   qkv = x @ [Wq|Wk|Wv] + [bq|bk|bv]
# ---------------------------------------------------------------------------
def _qkv_proj_kernel(x_ref, w_ref, b_ref, q_ref, k_ref, v_ref, *,
                     d_model, compute_dtype):
    x = x_ref[...].astype(compute_dtype)
    w = w_ref[...].astype(compute_dtype)
    qkv = jnp.dot(x, w, preferred_element_type=jnp.float32) + b_ref[...]
    q_ref[...] = qkv[:, 0:d_model].astype(q_ref.dtype)
    k_ref[...] = qkv[:, d_model:2 * d_model].astype(k_ref.dtype)
    v_ref[...] = qkv[:, 2 * d_model:3 * d_model].astype(v_ref.dtype)


# ---------------------------------------------------------------------------
# Kernel 2a: attention fast path — whole KV sequence in one tile (no scratch,
# plain numerically-stable softmax).
# ---------------------------------------------------------------------------
def _attn_single_kernel(q_ref, k_ref, v_ref, o_ref, *, scale, compute_dtype):
    # Fold the softmax scale into Q: O(L*dh) multiply instead of O(L*L).
    q = (q_ref[...] * scale).astype(compute_dtype)        # (HB, L, dh)
    k = k_ref[...].astype(compute_dtype)                   # (HB, L, dh)
    s = jnp.einsum("bqd,bkd->bqk", q, k,
                   preferred_element_type=jnp.float32)     # (HB, L, L)
    m = jnp.max(s, axis=-1, keepdims=True)
    p = jnp.exp(s - m)
    l = jnp.sum(p, axis=-1, keepdims=True)
    ctx = jnp.einsum("bqk,bkd->bqd", p.astype(compute_dtype),
                     v_ref[...].astype(compute_dtype),
                     preferred_element_type=jnp.float32)
    inv_l = pl.reciprocal(l, approx=True)                  # EUP slot, ~free
    o_ref[...] = (ctx * inv_l).astype(o_ref.dtype)


# ---------------------------------------------------------------------------
# Kernel 2b: attention for long sequences — flash-style online softmax.
#   grid = (BH // HB, L // TKV); scratch holds running max / sum / accumulator.
# ---------------------------------------------------------------------------
def _attn_online_kernel(q_ref, k_ref, v_ref, o_ref, m_sc, l_sc, acc_sc, *,
                        scale, compute_dtype):
    kv = pl.program_id(1)

    @pl.when(kv == 0)
    def _():
        m_sc[...] = jnp.full(m_sc.shape, -jnp.inf, m_sc.dtype)
        l_sc[...] = jnp.zeros(l_sc.shape, l_sc.dtype)
        acc_sc[...] = jnp.zeros(acc_sc.shape, acc_sc.dtype)

    q = (q_ref[...] * scale).astype(compute_dtype)         # (HB, L, dh)
    k = k_ref[...].astype(compute_dtype)                    # (HB, TKV, dh)
    # 'nt' contraction over the last axis of both operands — no explicit k.T.
    s = jnp.einsum("bqd,bkd->bqk", q, k,
                   preferred_element_type=jnp.float32)      # (HB, L, TKV)

    m_prev = m_sc[...]
    m_new = jnp.maximum(m_prev, jnp.max(s, axis=-1, keepdims=True))
    alpha = jnp.exp(m_prev - m_new)
    p = jnp.exp(s - m_new)
    l_sc[...] = alpha * l_sc[...] + jnp.sum(p, axis=-1, keepdims=True)
    acc_sc[...] = alpha * acc_sc[...] + jnp.einsum(
        "bqk,bkd->bqd", p.astype(compute_dtype),
        v_ref[...].astype(compute_dtype),
        preferred_element_type=jnp.float32)
    m_sc[...] = m_new

    @pl.when(kv == pl.num_programs(1) - 1)
    def _():
        inv_l = pl.reciprocal(l_sc[...], approx=True)
        o_ref[...] = (acc_sc[...] * inv_l).astype(o_ref.dtype)


# ---------------------------------------------------------------------------
# Kernel 3: output projection + residual + LayerNorm  (dropout p=0 -> identity)
# ---------------------------------------------------------------------------
def _out_ln_kernel(ctx_ref, w_ref, b_ref, x_ref, gamma_ref, beta_ref, o_ref, *,
                   eps, compute_dtype):
    ctx = ctx_ref[...].astype(compute_dtype)
    w = w_ref[...].astype(compute_dtype)
    out = jnp.dot(ctx, w, preferred_element_type=jnp.float32) + b_ref[...]
    out = out + x_ref[...]                                  # residual
    mean = jnp.mean(out, axis=-1, keepdims=True)
    var = jnp.mean((out - mean) ** 2, axis=-1, keepdims=True)
    normed = (out - mean) * jax.lax.rsqrt(var + eps)
    o_ref[...] = (normed * gamma_ref[...] + beta_ref[...]).astype(o_ref.dtype)


# ---------------------------------------------------------------------------
# Wrapper
# ---------------------------------------------------------------------------
def multi_head_attention(x, params, num_head, compute_dtype=jnp.float32,
                         max_kv_tile=512):
    B, L, D = x.shape
    assert D % num_head == 0
    dh = D // num_head
    BL = B * L
    BH = B * num_head
    scale = float(dh) ** (-0.5)

    x2d = x.reshape(BL, D)

    # ---- tile sizes -------------------------------------------------------
    TM = _pick_tile(BL, 512)                 # row tile for projection kernels
    TKV = _pick_tile(L, min(512, max_kv_tile))   # kv tile for attention
    # heads per attention grid step, bounded by a ~4 MiB score-tile budget
    hb_cap = max(1, (4 << 20) // max(1, 4 * L * max(TKV, dh)))
    HB = _pick_tile(BH, hb_cap, align=1)

    n_row_blocks = BL // TM
    n_hb = BH // HB
    n_kv = L // TKV

    # ---- Kernel 1: fused QKV projection -----------------------------------
    wqkv = jnp.concatenate([params["wq"], params["wk"], params["wv"]], axis=1)  # (D, 3D)
    bqkv = jnp.concatenate([params["bq"], params["bk"], params["bv"]], axis=1)  # (1, 3D)

    qkv_cost = pl.CostEstimate(
        flops=2 * BL * D * 3 * D,
        transcendentals=0,
        bytes_accessed=4 * (BL * D + D * 3 * D + 3 * D + 3 * BL * D),
    )
    q2d, k2d, v2d = pl.pallas_call(
        functools.partial(_qkv_proj_kernel, d_model=D, compute_dtype=compute_dtype),
        out_shape=tuple(jax.ShapeDtypeStruct((BL, D), jnp.float32) for _ in range(3)),
        grid=(n_row_blocks,),
        in_specs=[
            pl.BlockSpec((TM, D), lambda i: (i, 0)),        # x rows (pipelined)
            pl.BlockSpec((D, 3 * D), lambda i: (0, 0)),     # fused weight, resident
            pl.BlockSpec((1, 3 * D), lambda i: (0, 0)),     # fused bias, resident
        ],
        out_specs=(pl.BlockSpec((TM, D), lambda i: (i, 0)),) * 3,
        compiler_params=pltpu.CompilerParams(
            dimension_semantics=("parallel",),
            vmem_limit_bytes=VMEM_LIMIT_BYTES),
        cost_estimate=qkv_cost,
    )(x2d, wqkv, bqkv)

    # Row-major reshape exactly like torch .view(B*H, -1, dh) (zero-copy).
    qh = q2d.reshape(BH, L, dh)
    kh = k2d.reshape(BH, L, dh)
    vh = v2d.reshape(BH, L, dh)

    # ---- Kernel 2: scaled dot-product attention ----------------------------
    attn_cost = pl.CostEstimate(
        flops=4 * BH * L * L * dh,
        transcendentals=BH * L * L,
        bytes_accessed=4 * 4 * BH * L * dh,
    )
    if n_kv == 1:
        # Fast path: whole KV sequence resident per head block, exact softmax.
        ctx = pl.pallas_call(
            functools.partial(_attn_single_kernel, scale=scale,
                              compute_dtype=compute_dtype),
            out_shape=jax.ShapeDtypeStruct((BH, L, dh), jnp.float32),
            grid=(n_hb,),
            in_specs=[pl.BlockSpec((HB, L, dh), lambda hb: (hb, 0, 0))] * 3,
            out_specs=pl.BlockSpec((HB, L, dh), lambda hb: (hb, 0, 0)),
            compiler_params=pltpu.CompilerParams(
                dimension_semantics=("parallel",),
                vmem_limit_bytes=VMEM_LIMIT_BYTES),
            cost_estimate=attn_cost,
        )(qh, kh, vh)
    else:
        # Long sequences: flash-style online softmax across KV tiles.
        ctx = pl.pallas_call(
            functools.partial(_attn_online_kernel, scale=scale,
                              compute_dtype=compute_dtype),
            out_shape=jax.ShapeDtypeStruct((BH, L, dh), jnp.float32),
            grid=(n_hb, n_kv),
            in_specs=[
                pl.BlockSpec((HB, L, dh), lambda hb, kv: (hb, 0, 0)),     # Q resident
                pl.BlockSpec((HB, TKV, dh), lambda hb, kv: (hb, kv, 0)),  # K tile
                pl.BlockSpec((HB, TKV, dh), lambda hb, kv: (hb, kv, 0)),  # V tile
            ],
            out_specs=pl.BlockSpec((HB, L, dh), lambda hb, kv: (hb, 0, 0)),
            scratch_shapes=[
                pltpu.VMEM((HB, L, 1), jnp.float32),    # running max
                pltpu.VMEM((HB, L, 1), jnp.float32),    # running sum
                pltpu.VMEM((HB, L, dh), jnp.float32),   # output accumulator
            ],
            compiler_params=pltpu.CompilerParams(
                dimension_semantics=("parallel", "arbitrary"),
                vmem_limit_bytes=VMEM_LIMIT_BYTES),
            cost_estimate=attn_cost,
        )(qh, kh, vh)

    # Row-major reshape exactly like torch .view(B, -1, dh*H) (zero-copy).
    ctx2d = ctx.reshape(BL, D)

    # ---- Kernel 3: output projection + residual + LayerNorm ----------------
    out_cost = pl.CostEstimate(
        flops=2 * BL * D * D + 10 * BL * D,
        transcendentals=BL,
        bytes_accessed=4 * (3 * BL * D + D * D + 4 * D),
    )
    out2d = pl.pallas_call(
        functools.partial(_out_ln_kernel, eps=1e-5, compute_dtype=compute_dtype),
        out_shape=jax.ShapeDtypeStruct((BL, D), jnp.float32),
        grid=(n_row_blocks,),
        in_specs=[
            pl.BlockSpec((TM, D), lambda i: (i, 0)),   # ctx rows
            pl.BlockSpec((D, D), lambda i: (0, 0)),    # wo resident
            pl.BlockSpec((1, D), lambda i: (0, 0)),    # bo
            pl.BlockSpec((TM, D), lambda i: (i, 0)),   # residual x rows
            pl.BlockSpec((1, D), lambda i: (0, 0)),    # gamma
            pl.BlockSpec((1, D), lambda i: (0, 0)),    # beta
        ],
        out_specs=pl.BlockSpec((TM, D), lambda i: (i, 0)),
        compiler_params=pltpu.CompilerParams(
            dimension_semantics=("parallel",),
            vmem_limit_bytes=VMEM_LIMIT_BYTES),
        cost_estimate=out_cost,
    )(ctx2d, params["wo"], params["bo"], x2d, params["gamma"], params["beta"])

    return out2d.reshape(B, L, D)


# ---------------------------------------------------------------------------
# Deterministic parameter init (PyTorch nn.Linear default: U(-1/sqrt(in), 1/sqrt(in)))
# ---------------------------------------------------------------------------
def init_params(key, dim_model):
    ks = jax.random.split(key, 8)
    bound = 1.0 / (dim_model ** 0.5)

    def u(k, shape):
        return jax.random.uniform(k, shape, jnp.float32, -bound, bound)

    return {
        "wq": u(ks[0], (dim_model, dim_model)), "bq": u(ks[1], (1, dim_model)),
        "wk": u(ks[2], (dim_model, dim_model)), "bk": u(ks[3], (1, dim_model)),
        "wv": u(ks[4], (dim_model, dim_model)), "bv": u(ks[5], (1, dim_model)),
        "wo": u(ks[6], (dim_model, dim_model)), "bo": u(ks[7], (1, dim_model)),
        "gamma": jnp.ones((1, dim_model), jnp.float32),   # LayerNorm defaults
        "beta": jnp.zeros((1, dim_model), jnp.float32),
    }


# ---------------------------------------------------------------------------
# Pure-JAX reference (mirrors the PyTorch forward exactly)
# ---------------------------------------------------------------------------
def reference(x, params, num_head):
    B, L, D = x.shape
    dh = D // num_head
    q = x @ params["wq"] + params["bq"]
    k = x @ params["wk"] + params["bk"]
    v = x @ params["wv"] + params["bv"]
    q = q.reshape(B * num_head, -1, dh)
    k = k.reshape(B * num_head, -1, dh)
    v = v.reshape(B * num_head, -1, dh)
    scale = dh ** (-0.5)
    att = jnp.einsum("bqd,bkd->bqk", q, k) * scale
    att = jax.nn.softmax(att, axis=-1)
    ctx = jnp.einsum("bqk,bkd->bqd", att, v).reshape(B, -1, dh * num_head)
    out = ctx @ params["wo"] + params["bo"] + x
    mean = jnp.mean(out, axis=-1, keepdims=True)
    var = jnp.mean((out - mean) ** 2, axis=-1, keepdims=True)
    return (out - mean) / jnp.sqrt(var + 1e-5) * params["gamma"] + params["beta"]


if __name__ == "__main__":
    D, H = 32, 4   # dim_model, num_head  (dim_head = 8)

    key = jax.random.PRNGKey(0)
    kx1, kx2, kp = jax.random.split(key, 3)
    params = init_params(kp, D)

    # Case 1: B=2, L=8 — exercises the single-KV-tile fast-path kernel.
    x1 = jax.random.normal(kx1, (2, 8, D), jnp.float32)
    out1 = jax.block_until_ready(multi_head_attention(x1, params, H))
    ref1 = reference(x1, params, H)
    assert out1.shape == x1.shape
    assert jnp.allclose(out1, ref1, atol=5e-3, rtol=5e-3), "mismatch (fast path)"

    # Case 2: B=2, L=16 with max_kv_tile=8 — exercises the online-softmax path.
    x2 = jax.random.normal(kx2, (2, 16, D), jnp.float32)
    out2 = jax.block_until_ready(
        multi_head_attention(x2, params, H, max_kv_tile=8))
    ref2 = reference(x2, params, H)
    assert out2.shape == x2.shape
    assert jnp.allclose(out2, ref2, atol=5e-3, rtol=5e-3), "mismatch (online path)"

    # bf16-operand / f32-accumulate MXU path (v6e/v7x recommendation) — just
    # verify it compiles, runs and stays finite.
    out_bf16 = jax.block_until_ready(
        multi_head_attention(x1, params, H, compute_dtype=jnp.bfloat16))
    assert bool(jnp.all(jnp.isfinite(out_bf16)))

    print("KERNEL_OK")
</pallas_src>

<mosaic_0001>
module attributes {stable_mosaic.version = 11 : i64} {
  func.func @_qkv_proj_kernel(%arg0: i32, %arg1: memref<16x32xf32, #tpu.memory_space<vmem>>, %arg2: memref<32x96xf32, #tpu.memory_space<vmem>>, %arg3: memref<1x96xf32, #tpu.memory_space<vmem>>, %arg4: memref<16x32xf32, #tpu.memory_space<vmem>>, %arg5: memref<16x32xf32, #tpu.memory_space<vmem>>, %arg6: memref<16x32xf32, #tpu.memory_space<vmem>>) attributes {dimension_semantics = [#tpu.dimension_semantics<parallel>], iteration_bounds = array<i64: 1>, scalar_prefetch = 0 : i64, scratch_operands = 0 : i64, tpu.core_type = #tpu.core_type<tc>, window_params = [{transform_indices = @transform_0, window_bounds = array<i64: 16, 32>}, {pipeline_mode = #tpu.pipeline_mode<synchronous>, transform_indices = @transform_1, window_bounds = array<i64: 32, 96>}, {pipeline_mode = #tpu.pipeline_mode<synchronous>, transform_indices = @transform_2, window_bounds = array<i64: 1, 96>}, {transform_indices = @transform_3, window_bounds = array<i64: 16, 32>}, {transform_indices = @transform_4, window_bounds = array<i64: 16, 32>}, {transform_indices = @transform_5, window_bounds = array<i64: 16, 32>}]} {
    %c0 = arith.constant 0 : index
    %c0_0 = arith.constant 0 : index
    %0 = vector.load %arg1[%c0, %c0_0] : memref<16x32xf32, #tpu.memory_space<vmem>>, vector<16x32xf32>
    %c0_1 = arith.constant 0 : index
    %c0_2 = arith.constant 0 : index
    %1 = vector.load %arg2[%c0_1, %c0_2] : memref<32x96xf32, #tpu.memory_space<vmem>>, vector<32x96xf32>
    %cst = arith.constant dense<0.000000e+00> : vector<16x96xf32>
    %2 = tpu.matmul %0, %1, %cst {dimension_numbers = #tpu.dot_dimension_numbers<[1], [0], [0], [1], [0, 0, 1, 1], [], []>} : vector<16x32xf32>, vector<32x96xf32>, vector<16x96xf32> -> vector<16x96xf32>
    %c0_3 = arith.constant 0 : index
    %c0_4 = arith.constant 0 : index
    %3 = vector.load %arg3[%c0_3, %c0_4] : memref<1x96xf32, #tpu.memory_space<vmem>>, vector<1x96xf32>
    %4 = vector.broadcast %3 : vector<1x96xf32> to vector<16x96xf32>
    %5 = arith.addf %2, %4 : vector<16x96xf32>
    %6 = vector.extract_strided_slice %5 {offsets = [0, 0], sizes = [16, 32], strides = [1, 1]} : vector<16x96xf32> to vector<16x32xf32>
    %c0_5 = arith.constant 0 : index
    %c0_6 = arith.constant 0 : index
    %7 = vector.load %arg4[%c0_5, %c0_6] : memref<16x32xf32, #tpu.memory_space<vmem>>, vector<16x32xf32>
    tpu.vector_store %arg4[%c0_5, %c0_6], %6 {strides = array<i32>} : memref<16x32xf32, #tpu.memory_space<vmem>>, vector<16x32xf32>,
    %8 = vector.extract_strided_slice %5 {offsets = [0, 32], sizes = [16, 32], strides = [1, 1]} : vector<16x96xf32> to vector<16x32xf32>
    %c0_7 = arith.constant 0 : index
    %c0_8 = arith.constant 0 : index
    %9 = vector.load %arg5[%c0_7, %c0_8] : memref<16x32xf32, #tpu.memory_space<vmem>>, vector<16x32xf32>
    tpu.vector_store %arg5[%c0_7, %c0_8], %8 {strides = array<i32>} : memref<16x32xf32, #tpu.memory_space<vmem>>, vector<16x32xf32>,
    %10 = vector.extract_strided_slice %5 {offsets = [0, 64], sizes = [16, 32], strides = [1, 1]} : vector<16x96xf32> to vector<16x32xf32>
    %c0_9 = arith.constant 0 : index
    %c0_10 = arith.constant 0 : index
    %11 = vector.load %arg6[%c0_9, %c0_10] : memref<16x32xf32, #tpu.memory_space<vmem>>, vector<16x32xf32>
    tpu.vector_store %arg6[%c0_9, %c0_10], %10 {strides = array<i32>} : memref<16x32xf32, #tpu.memory_space<vmem>>, vector<16x32xf32>,
    return
  }
  func.func @transform_0(%arg0: i32) -> (i32, i32) {
    %c0_i32 = arith.constant 0 : i32
    %c0_i32_0 = arith.constant 0 : i32
    return %arg0, %c0_i32 : i32, i32
  }
  func.func @transform_1(%arg0: i32) -> (i32, i32) {
    %c0_i32 = arith.constant 0 : i32
    %c0_i32_0 = arith.constant 0 : i32
    %c0_i32_1 = arith.constant 0 : i32
    return %c0_i32, %c0_i32_0 : i32, i32
  }
  func.func @transform_2(%arg0: i32) -> (i32, i32) {
    %c0_i32 = arith.constant 0 : i32
    %c0_i32_0 = arith.constant 0 : i32
    %c0_i32_1 = arith.constant 0 : i32
    return %c0_i32, %c0_i32_0 : i32, i32
  }
  func.func @transform_3(%arg0: i32) -> (i32, i32) {
    %c0_i32 = arith.constant 0 : i32
    %c0_i32_0 = arith.constant 0 : i32
    return %arg0, %c0_i32 : i32, i32
  }
  func.func @transform_4(%arg0: i32) -> (i32, i32) {
    %c0_i32 = arith.constant 0 : i32
    %c0_i32_0 = arith.constant 0 : i32
    return %arg0, %c0_i32 : i32, i32
  }
  func.func @transform_5(%arg0: i32) -> (i32, i32) {
    %c0_i32 = arith.constant 0 : i32
    %c0_i32_0 = arith.constant 0 : i32
    return %arg0, %c0_i32 : i32, i32
  }
}

</mosaic_0001>

<llo_original>
// kernel: tpu_custom_call.1
$region0: #{tpu_custom_call.1}
  #allocation0 [shape = 'u32[]', space=smem, size = 0x4, offset = 0x4, fixed_abs, tag = 'smem constant byte address 0x4 - core index']
  #allocation1 [shape = 'u32[144,128]{1,0:T(1,128)}', space=vmem, size = 0x12000, scoped, tag = 'internal scratch']
  %s0 = inlined_call_operand.hbm [shape: f32[16,32], index: 0, kind: input, shape index: {}]
  %s1 = inlined_call_operand.hbm [shape: f32[32,96], index: 1, kind: input, shape index: {}]
  %s2 = inlined_call_operand.vmem [shape: f32[1,96], index: 2, kind: input, shape index: {}]
  %s3 = inlined_call_operand.hbm [shape: f32[16,32], index: 3, kind: output, shape index: {0}]
  %s4 = inlined_call_operand.hbm [shape: f32[16,32], index: 4, kind: output, shape index: {1}]
  %s5 = inlined_call_operand.hbm [shape: f32[16,32], index: 5, kind: output, shape index: {2}]
  %6 = xla_tuple %s3, %s4, %s5
  %s7 = sld [smem:[#allocation0]]
  $region46: #{tpu_custom_call.1} parent=0
    _
  %s9 = ssub.s32 1, %s7
  %s10 = scalar_select 0, %s9, %s7
  $region1: #{tpu_custom_call.1} parent=0
    #allocation2 [shape = 'u8[8192]{0}', space=vmem, size = 0x2000, scoped, tag = 'input window, operand 0, single buffered']
    #allocation3 [shape = 's32[1]{0}', space=sflag, size = 0x4, scoped, tag = 'scoped memory for tpu_custom_call.1']
    #allocation4 [shape = 's32[1]{0}', space=sflag, size = 0x4, scoped, tag = 'scoped memory for tpu_custom_call.1']
    #allocation5 [shape = 'u8[16384]{0}', space=vmem, size = 0x4000, scoped, tag = 'input window, operand 1, single buffered']
    #allocation6 [shape = 's32[1]{0}', space=sflag, size = 0x4, scoped, tag = 'scoped memory for tpu_custom_call.1']
    #allocation7 [shape = 'u8[8192]{0}', space=vmem, size = 0x2000, scoped, tag = 'output window, operand 0, single buffered']
    #allocation8 [shape = 'u8[8192]{0}', space=vmem, size = 0x2000, scoped, tag = 'output window, operand 1, single buffered']
    #allocation9 [shape = 's32[1]{0}', space=sflag, size = 0x4, scoped, tag = 'scoped memory for tpu_custom_call.1']
    #allocation10 [shape = 'u8[8192]{0}', space=vmem, size = 0x2000, scoped, tag = 'output window, operand 2, single buffered']
    %11 = vsyncpa [#allocation3], 0
    %12 = vsyncpa [#allocation6], 0
    %13 = vsyncpa [#allocation4], 0
    %14 = vsyncpa [#allocation9], 0
    // Predicated region
    $region2: #{tpu_custom_call.1} parent=1 // pred_check
      _
    $region3: #{tpu_custom_call.1} parent=1 // pred_check_branch
      %16 = sbr.rel (0) target = $region5
    $region4: #{tpu_custom_call.1} parent=1 // pred_region
      %s18 = ssub.s32 256, 256
      %19 = vsyncadd [#allocation3], %s18
      %s20 = sshll.u32 [#allocation2], 4
      %s21 = int_to_ptr.vmem [resolvable:$true] %s20
      %26 = dma.hbm_to_vmem [thread:$0]  %s0, 256, %s21, [#allocation3], 128, 128, 8
    $region5: #{tpu_custom_call.1} parent=1 // pred_fallthru
      _
    // Predicated region
    $region6: #{tpu_custom_call.1} parent=1 // pred_check
      _
    $region7: #{tpu_custom_call.1} parent=1 // pred_check_branch
      %28 = sbr.rel (0) target = $region9
    $region8: #{tpu_custom_call.1} parent=1 // pred_region
      %s30 = ssub.s32 512, 512
      %31 = vsyncadd [#allocation6], %s30
      %s32 = sshll.u32 [#allocation5], 4
      %s33 = int_to_ptr.vmem [resolvable:$true] %s32
      %38 = dma.hbm_to_vmem [thread:$0]  %s1, 512, %s33, [#allocation6], 128, 128, 8
    $region9: #{tpu_custom_call.1} parent=1 // pred_fallthru
      _
    // Predicated region
    $region10: #{tpu_custom_call.1} parent=1 // pred_check
      _
    $region11: #{tpu_custom_call.1} parent=1 // pred_check_branch
      %40 = sbr.rel (0) target = $region13
    $region12: #{tpu_custom_call.1} parent=1 // pred_region
      _
    $region13: #{tpu_custom_call.1} parent=1 // pred_fallthru
      _
    // Predicated region
    $region14: #{tpu_custom_call.1} parent=1 // pred_check
      _
    $region15: #{tpu_custom_call.1} parent=1 // pred_check_branch
      %42 = sbr.rel (0) target = $region17
    $region16: #{tpu_custom_call.1} parent=1 // pred_region
      %43 = dma.done [#allocation3], 256
    $region17: #{tpu_custom_call.1} parent=1 // pred_fallthru
      _
    // Predicated region
    $region18: #{tpu_custom_call.1} parent=1 // pred_check
      _
    $region19: #{tpu_custom_call.1} parent=1 // pred_check_branch
      %45 = sbr.rel (0) target = $region21
    $region20: #{tpu_custom_call.1} parent=1 // pred_region
      %46 = dma.done [#allocation6], 512
    $region21: #{tpu_custom_call.1} parent=1 // pred_fallthru
      _
    %v47 = vld [vmem:[#allocation2] sm:$0xff]
    %v48 = vld [vmem:[#allocation2 + $0x8] sm:$0xff]
    %v49 = vld [vmem:[#allocation5] sm:$0xff]
    %v50 = vld [vmem:[#allocation5 + $0x8] sm:$0xff]
    %v51 = vld [vmem:[#allocation5 + $0x10] sm:$0xff]
    %v52 = vld [vmem:[#allocation5 + $0x18] sm:$0xff]
    %v53 = vld [vmem:[%s2] sm:$0x1]
    %v55 = vlaneseq
    %v56 = vshrl.u32 %v55, 7
    %v57 = vsub.s32 0, %v56
    %v58 = vrot.slane %v53, %v57
    %vm60 = vcmask 261120
    %v62 = vsel %vm60, %v47, 0
    %v65 = vsel %vm60, %v48, 0
    %67 = vmatprep.subr.mxu0 0.0
    %68 = vmatpush1.msra.mxu0 0.0
    %69 = vmatprep.subr.mxu0 0.0
    %70 = vmatpush1.msra.mxu0 0.0
    %71 = vmatprep.subr.mxu0 0.0
    %72 = vmatpush1.msra.mxu0 0.0
    %73 = vmatprep.subr.mxu0 0.0
    %74 = vmatpush1.msra.mxu0 0.0
    %75 = vmatprep.subr.mxu0 0.0
    %76 = vmatpush1.msra.mxu0 0.0
    %77 = vmatprep.subr.mxu0 0.0
    %78 = vmatpush1.msra.mxu0 0.0
    %79 = vmatprep.subr.mxu0 0.0
    %80 = vmatpush1.msra.mxu0 0.0
    %81 = vmatprep.subr.mxu0 0.0
    %82 = vmatpush1.msra.mxu0 0.0
    %83 = vmatprep.subr.mxu0 0.0
    %84 = vmatpush1.msra.mxu0 0.0
    %85 = vmatprep.subr.mxu0 0.0
    %86 = vmatpush1.msra.mxu0 0.0
    %87 = vmatprep.subr.mxu0 0.0
    %88 = vmatpush1.msra.mxu0 0.0
    %89 = vmatprep.subr.mxu0 0.0
    %90 = vmatpush1.msra.mxu0 0.0
    %91 = vmatprep.subr.mxu0 0.0
    %92 = vmatpush1.msra.mxu0 %v52
    %93 = vmatprep.subr.mxu0 0.0
    %94 = vmatpush1.msra.mxu0 %v51
    %95 = vmatprep.subr.mxu0 0.0
    %96 = vmatpush1.msra.mxu0 %v50
    %97 = vmatprep.subr.mxu0 0.0
    %98 = vmatpush1.msra.mxu0 %v49
    %99 = vmatprep.subr.mxu0 0.0
    %100 = vmatpush2.msra.mxu0 0.0
    %101 = vmatprep.subr.mxu0 0.0
    %102 = vmatpush2.msra.mxu0 0.0
    %103 = vmatprep.subr.mxu0 0.0
    %104 = vmatpush2.msra.mxu0 0.0
    %105 = vmatprep.subr.mxu0 0.0
    %106 = vmatpush2.msra.mxu0 0.0
    %107 = vmatprep.subr.mxu0 0.0
    %108 = vmatpush2.msra.mxu0 0.0
    %109 = vmatprep.subr.mxu0 0.0
    %110 = vmatpush2.msra.mxu0 0.0
    %111 = vmatprep.subr.mxu0 0.0
    %112 = vmatpush2.msra.mxu0 0.0
    %113 = vmatprep.subr.mxu0 0.0
    %114 = vmatpush2.msra.mxu0 0.0
    %115 = vmatprep.subr.mxu0 0.0
    %116 = vmatpush2.msra.mxu0 0.0
    %117 = vmatprep.subr.mxu0 0.0
    %118 = vmatpush2.msra.mxu0 0.0
    %119 = vmatprep.subr.mxu0 0.0
    %120 = vmatpush2.msra.mxu0 0.0
    %121 = vmatprep.subr.mxu0 0.0
    %122 = vmatpush2.msra.mxu0 0.0
    %123 = vmatprep.subr.mxu0 0.0
    %124 = vmatpush2.msra.mxu0 0.0
    %125 = vmatprep.subr.mxu0 0.0
    %126 = vmatpush2.msra.mxu0 0.0
    %127 = vmatprep.subr.mxu0 0.0
    %128 = vmatpush2.msra.mxu0 0.0
    %129 = vmatprep.subr.mxu0 0.0
    %130 = vmatpush2.msra.mxu0 0.0
    %131 = vmatprep.mubr.f32.mxu0 0.0
    %132 = vmatmul.mubr.f32.gmra.mxu0 %v62
    %v133 = vpop.f32.mrf.mxu0
    %v134 = vadd.f32 %v58, %v133
    %v135 = vpop.f32.mrf.mxu0
    %136 = vmatprep.mubr.f32.mxu0 0.0
    %137 = vmatmul.mubr.f32.gmra.mxu0 %v65
    %v138 = vpop.f32.mrf.mxu0
    %v139 = vadd.f32 %v58, %v138
    %v140 = vpop.f32.mrf.mxu0
    %141 = vdwg.mxu0
    %142 = vst.msk [vmem:[#allocation7] sm:$0xff] %vm60, %v134
    %143 = vst.msk [vmem:[#allocation7 + $0x8] sm:$0xff] %vm60, %v139
    %146 = vrot.lane.b32.xlu0 %v134, 96
    %v147 = vpop.permute.xlu0 %146
    %148 = vrot.lane.b32.xlu0 %v139, 96
    %v149 = vpop.permute.xlu0 %148
    %152 = vst.msk [vmem:[#allocation8] sm:$0xff] %vm60, %v147
    %153 = vst.msk [vmem:[#allocation8 + $0x8] sm:$0xff] %vm60, %v149
    %154 = vrot.lane.b32.xlu0 %v134, 64
    %v155 = vpop.permute.xlu0 %154
    %156 = vrot.lane.b32.xlu0 %v139, 64
    %v157 = vpop.permute.xlu0 %156
    %160 = vst.msk [vmem:[#allocation10] sm:$0xff] %vm60, %v155
    %161 = vst.msk [vmem:[#allocation10 + $0x8] sm:$0xff] %vm60, %v157
    // Predicated region
    $region22: #{tpu_custom_call.1} parent=1 // pred_check
      _
    $region23: #{tpu_custom_call.1} parent=1 // pred_check_branch
      %163 = sbr.rel (0) target = $region25
    $region24: #{tpu_custom_call.1} parent=1 // pred_region
      %s165 = ssub.s32 256, 256
      %166 = vsyncadd [#allocation4], %s165
      %s167 = sshll.u32 [#allocation7], 4
      %s168 = int_to_ptr.vmem [resolvable:$true] %s167
      %173 = dma.vmem_to_hbm [thread:$0]  %s168, 256, %s3, [#allocation4], 128, 128, 8
    $region25: #{tpu_custom_call.1} parent=1 // pred_fallthru
      _
    // Predicated region
    $region26: #{tpu_custom_call.1} parent=1 // pred_check
      _
    $region27: #{tpu_custom_call.1} parent=1 // pred_check_branch
      %175 = sbr.rel (0) target = $region29
    $region28: #{tpu_custom_call.1} parent=1 // pred_region
      %s177 = ssub.s32 256, 256
      %178 = vsyncadd [#allocation9], %s177
      %s179 = sshll.u32 [#allocation8], 4
      %s180 = int_to_ptr.vmem [resolvable:$true] %s179
      %185 = dma.vmem_to_hbm [thread:$0]  %s180, 256, %s4, [#allocation9], 128, 128, 8
    $region29: #{tpu_custom_call.1} parent=1 // pred_fallthru
      _
    // Predicated region
    $region30: #{tpu_custom_call.1} parent=1 // pred_check
      _
    $region31: #{tpu_custom_call.1} parent=1 // pred_check_branch
      %187 = sbr.rel (0) target = $region33
    $region32: #{tpu_custom_call.1} parent=1 // pred_region
      %s189 = ssub.s32 256, 256
      %190 = vsyncadd [#allocation9], %s189
      %s191 = sshll.u32 [#allocation10], 4
      %s192 = int_to_ptr.vmem [resolvable:$true] %s191
      %197 = dma.vmem_to_hbm [thread:$0]  %s192, 256, %s5, [#allocation9], 128, 128, 8
    $region33: #{tpu_custom_call.1} parent=1 // pred_fallthru
      _
    // Predicated region
    $region34: #{tpu_custom_call.1} parent=1 // pred_check
      _
    $region35: #{tpu_custom_call.1} parent=1 // pred_check_branch
      %199 = sbr.rel (0) target = $region37
    $region36: #{tpu_custom_call.1} parent=1 // pred_region
      %200 = dma.done [#allocation4], 256
    $region37: #{tpu_custom_call.1} parent=1 // pred_fallthru
      _
    // Predicated region
    $region38: #{tpu_custom_call.1} parent=1 // pred_check
      _
    $region39: #{tpu_custom_call.1} parent=1 // pred_check_branch
      %202 = sbr.rel (0) target = $region41
    $region40: #{tpu_custom_call.1} parent=1 // pred_region
      %203 = dma.done [#allocation9], 256
    $region41: #{tpu_custom_call.1} parent=1 // pred_fallthru
      _
    // Predicated region
    $region42: #{tpu_custom_call.1} parent=1 // pred_check
      _
    $region43: #{tpu_custom_call.1} parent=1 // pred_check_branch
      %205 = sbr.rel (0) target = $region45
    $region44: #{tpu_custom_call.1} parent=1 // pred_region
      %206 = dma.done [#allocation9], 256
    $region45: #{tpu_custom_call.1} parent=1 // pred_fallthru
      _
    %207 = vsyncpa [#allocation3], 1
    %208 = vsyncpa [#allocation6], 1
    %209 = vsyncpa [#allocation4], 1
    %210 = vsyncpa [#allocation9], 1

</llo_original>
